<compile_context>
chip_gen: v7x
topology: tpu7x:2x2x1
jax: 0.10.0
libtpu: 0.0.40
codegen_flags: <defaults>
</compile_context>

<pallas_src>
import functools

import jax
import jax.numpy as jnp
from jax.experimental import pallas as pl
from jax.experimental.pallas import tpu as pltpu

_LANES = 128        # vreg lane width -> lane-dense layout
_TILE_ROWS = 512    # (512,128) f32 tile = 256 KiB; 2-deep pipeline = 512 KiB/input
_NCORES = 2         # leading 'parallel' grid axis (2 TCs on v7x; harmless on v5e/v6e)
_PAD = 1e30         # sentinel magnitude: softplus(-1e30) == 0 exactly in f32


def _bce_partial_kernel(x_ref, out_ref, *, flip_sign: bool):
    """Accumulate stable softplus loss sums into a lane-dense (8,128) partial."""

    @pl.when(pl.program_id(1) == 0)
    def _():
        out_ref[...] = jnp.zeros_like(out_ref)

    x = x_ref[...].astype(jnp.float32)
    z = -x if flip_sign else x
    # BCEWithLogits: y=1 -> softplus(-x), y=0 -> softplus(x); numerically stable form.
    loss = jnp.maximum(z, 0.0) + jnp.log1p(jnp.exp(-jnp.abs(z)))
    # Fold TILE_ROWS sublanes down to 8 with pure VPU adds (no per-step XLU
    # cross-lane reduce, no per-step scalar store).
    out_ref[...] += jnp.sum(loss.reshape(-1, 8, _LANES), axis=0)


def _bce_partial_sums(x, *, flip_sign: bool):
    """Stream one logit tensor; return (NCORES*8, 128) f32 partial loss sums."""
    flat = x.reshape(-1)
    n = flat.shape[0]
    chunk = _NCORES * _TILE_ROWS * _LANES
    padded_n = pl.cdiv(n, chunk) * chunk
    # Sentinel gives exactly zero loss after the in-kernel sign flip.
    pad_value = _PAD if flip_sign else -_PAD
    if padded_n != n:
        flat = jnp.pad(flat, (0, padded_n - n), constant_values=pad_value)
    x2d = flat.reshape(-1, _LANES)  # lane-dense [rows, 128], rows % (NCORES*TILE_ROWS) == 0
    tiles_per_core = x2d.shape[0] // (_NCORES * _TILE_ROWS)

    return pl.pallas_call(
        functools.partial(_bce_partial_kernel, flip_sign=flip_sign),
        out_shape=jax.ShapeDtypeStruct((_NCORES * 8, _LANES), jnp.float32),
        grid=(_NCORES, tiles_per_core),
        in_specs=[
            pl.BlockSpec(
                (_TILE_ROWS, _LANES),
                lambda c, i: (c * tiles_per_core + i, 0),
            )
        ],
        out_specs=pl.BlockSpec((8, _LANES), lambda c, i: (c, 0)),
        compiler_params=pltpu.CompilerParams(
            dimension_semantics=("parallel", "arbitrary")
        ),
    )(x2d)


def my_bce_with_logits_loss(positives, negatives):
    # Equivalent to BCEWithLogitsLoss(cat(pos, neg), cat(ones, zeros)):
    # mean over all elements of softplus(-pos) and softplus(neg).
    pos_partials = _bce_partial_sums(positives, flip_sign=True)
    neg_partials = _bce_partial_sums(negatives, flip_sign=False)
    total = jnp.sum(pos_partials) + jnp.sum(neg_partials)
    count = positives.size + negatives.size  # static true element count
    return total * (1.0 / count)


def _reference(positives, negatives):
    values = jnp.concatenate((positives, negatives), axis=-1)
    labels = jnp.concatenate(
        (jnp.ones_like(positives), jnp.zeros_like(negatives)), axis=-1
    )
    loss = (
        jnp.maximum(values, 0.0)
        - values * labels
        + jnp.log1p(jnp.exp(-jnp.abs(values)))
    )
    return jnp.mean(loss)


if __name__ == "__main__":
    key = jax.random.PRNGKey(0)
    kp, kn = jax.random.split(key)
    # Small shapes consistent with the module: scores over candidates.
    positives = jax.random.normal(kp, (2, 4, 8), dtype=jnp.float32)
    negatives = jax.random.normal(kn, (2, 4, 12), dtype=jnp.float32)

    loss = my_bce_with_logits_loss(positives, negatives)
    loss = jax.block_until_ready(loss)

    ref = _reference(positives, negatives)
    assert jnp.allclose(loss, ref, atol=1e-5, rtol=1e-5), (loss, ref)
    print("KERNEL_OK")
</pallas_src>

<mosaic_0001>
module attributes {stable_mosaic.version = 11 : i64} {
  func.func @_bce_partial_kernel(%arg0: i32, %arg1: i32, %arg2: memref<512x128xf32, #tpu.memory_space<vmem>>, %arg3: memref<8x128xf32, #tpu.memory_space<vmem>>) attributes {dimension_semantics = [#tpu.dimension_semantics<parallel>, #tpu.dimension_semantics<arbitrary>], iteration_bounds = array<i64: 2, 1>, scalar_prefetch = 0 : i64, scratch_operands = 0 : i64, tpu.core_type = #tpu.core_type<tc>, window_params = [{transform_indices = @transform_0, window_bounds = array<i64: 512, 128>}, {transform_indices = @transform_1, window_bounds = array<i64: 8, 128>}]} {
    %c0_i32 = arith.constant 0 : i32
    %0 = arith.cmpi eq, %arg1, %c0_i32 : i32
    %1 = arith.extui %0 : i1 to i32
    %c0_i32_0 = arith.constant 0 : i32
    %2 = arith.cmpi ne, %1, %c0_i32_0 : i32
    scf.if %2 {
      %cst_9 = arith.constant 0.000000e+00 : f32
      %19 = vector.broadcast %cst_9 : f32 to vector<8x128xf32>
      %c0_10 = arith.constant 0 : index
      %c0_11 = arith.constant 0 : index
      %20 = vector.load %arg3[%c0_10, %c0_11] : memref<8x128xf32, #tpu.memory_space<vmem>>, vector<8x128xf32>
      tpu.vector_store %arg3[%c0_10, %c0_11], %19 {strides = array<i32>} : memref<8x128xf32, #tpu.memory_space<vmem>>, vector<8x128xf32>,
    } else {
    }
    %c0 = arith.constant 0 : index
    %c0_1 = arith.constant 0 : index
    %3 = vector.load %arg2[%c0, %c0_1] : memref<512x128xf32, #tpu.memory_space<vmem>>, vector<512x128xf32>
    %cst = arith.constant 0.000000e+00 : f32
    %4 = vector.broadcast %cst : f32 to vector<512x128xf32>
    %5 = arith.subf %4, %3 : vector<512x128xf32>
    %cst_2 = arith.constant 0.000000e+00 : f32
    %6 = vector.broadcast %cst_2 : f32 to vector<512x128xf32>
    %7 = arith.maximumf %5, %6 : vector<512x128xf32>
    %8 = math.absf %5 : vector<512x128xf32>
    %cst_3 = arith.constant 0.000000e+00 : f32
    %9 = vector.broadcast %cst_3 : f32 to vector<512x128xf32>
    %10 = arith.subf %9, %8 : vector<512x128xf32>
    %11 = math.exp %10 : vector<512x128xf32>
    %12 = math.log1p %11 : vector<512x128xf32>
    %13 = arith.addf %7, %12 : vector<512x128xf32>
    %c0_4 = arith.constant 0 : index
    %c0_5 = arith.constant 0 : index
    %14 = vector.load %arg3[%c0_4, %c0_5] : memref<8x128xf32, #tpu.memory_space<vmem>>, vector<8x128xf32>
    %15 = vector.shape_cast %13 : vector<512x128xf32> to vector<64x8x128xf32>
    %cst_6 = arith.constant dense<0.000000e+00> : vector<8x128xf32>
    %16 = vector.multi_reduction <add>, %15, %cst_6 [0] : vector<64x8x128xf32> to vector<8x128xf32>
    %17 = arith.addf %14, %16 : vector<8x128xf32>
    %c0_7 = arith.constant 0 : index
    %c0_8 = arith.constant 0 : index
    %18 = vector.load %arg3[%c0_7, %c0_8] : memref<8x128xf32, #tpu.memory_space<vmem>>, vector<8x128xf32>
    tpu.vector_store %arg3[%c0_7, %c0_8], %17 {strides = array<i32>} : memref<8x128xf32, #tpu.memory_space<vmem>>, vector<8x128xf32>,
    return
  }
  func.func @transform_0(%arg0: i32, %arg1: i32) -> (i32, i32) {
    %c1_i32 = arith.constant 1 : i32
    %0 = arith.muli %arg0, %c1_i32 : i32
    %1 = arith.addi %0, %arg1 : i32
    %c0_i32 = arith.constant 0 : i32
    %c0_i32_0 = arith.constant 0 : i32
    return %1, %c0_i32 : i32, i32
  }
  func.func @transform_1(%arg0: i32, %arg1: i32) -> (i32, i32) {
    %c0_i32 = arith.constant 0 : i32
    %c0_i32_0 = arith.constant 0 : i32
    return %arg0, %c0_i32 : i32, i32
  }
}

</mosaic_0001>

<llo_original>
// kernel: tpu_custom_call.1
$region0: #{tpu_custom_call.1}
  #allocation0 [shape = 'u32[]', space=smem, size = 0x4, offset = 0x4, fixed_abs, tag = 'smem constant byte address 0x4 - core index']
  #allocation1 [shape = 'u32[144,128]{1,0:T(1,128)}', space=vmem, size = 0x12000, scoped, tag = 'internal scratch']
  %s0 = inlined_call_operand.hbm [shape: f32[1024,128], index: 0, kind: input, shape index: {}]
  %s1 = inlined_call_operand.hbm [shape: f32[16,128], index: 1, kind: output, shape index: {}]
  %s2 = sld [smem:[#allocation0]]
  $region45: #{tpu_custom_call.1} parent=0
    _
  %s4 = ssub.s32 1, %s2
  %s5 = scalar_select 0, %s4, %s2
  $region1: #{tpu_custom_call.1} parent=0
    #allocation2 [shape = 'u8[524288]{0}', space=vmem, size = 0x80000, scoped, tag = 'input window, operand 0']
    #allocation3 [shape = 's32[2]{0}', space=sflag, size = 0x8, scoped, tag = 'scoped memory for tpu_custom_call.1']
    #allocation4 [shape = 's32[2]{0}', space=sflag, size = 0x8, scoped, tag = 'scoped memory for tpu_custom_call.1']
    #allocation5 [shape = 'u8[8192]{0}', space=vmem, size = 0x2000, scoped, tag = 'output window, operand 0']
    %6 = vsyncpa [#allocation3], 0
    %s7 = scalar_lea.sflag [#allocation3], 1
    %8 = vsyncpa %s7, 0
    %9 = vsyncpa [#allocation4], 0
    %s10 = scalar_lea.sflag [#allocation4], 1
    %11 = vsyncpa %s10, 0
    loop: start=0, step=1, limit=4
    $region2: #{tpu_custom_call.1} parent=1 // loop_pre_header
      _
    $region3: #{tpu_custom_call.1} parent=1 // loop_header
      %s13 = sphi 0, %s17
      %p14 = scmp.ge.s32.totalorder %s13, 4
      %s20 = sphi 0, %s32
      %s21 = sphi 0, %s28
      %s22 = sphi 0, %s20
      %s23 = sphi 0, %s21
      %s24 = sphi 0, %s22
      %s25 = sphi 0, %s23
      %s37 = sphi 0, %s39
      %s40 = sphi 0, %s37
      %s41 = sphi 0, %s40
      %s57 = sphi 0, %s41
      %s63 = sphi 0, %s65
      %s66 = sphi 0, %s63
      %s67 = sphi 0, %s66
      %s83 = sphi 0, %s67
    $region4: #{tpu_custom_call.1} parent=1 // loop_header_branch
      %16 = sbr.rel (%p14) target = $region8
    $region5: #{tpu_custom_call.1} parent=1 // loop_body
      %s18 = ssub.s32 %s13, 1
      %s19 = ssub.s32 %s13, 2
      %s26 = sadd.s32 1, %s21
      %p27 = scmp.ge.s32.totalorder %s26, 1
      %s28 = scalar_select %p27, 0, %s26
      %s29 = sadd.s32 1, %s20
      %s30 = scalar_select %p27, %s29, %s20
      %p31 = scmp.ge.s32.totalorder %s30, 2
      %s32 = scalar_select %p31, 0, %s30
      %s33 = sadd.s32 %s20, %s21
      %s34 = sadd.s32 %s32, %s28
      %s35 = ssub.s32 %s33, %s34
      %p36 = scmp.eq.s32.totalorder %s35, 0
      %s38 = sadd.s32 %s37, 1
      %s39 = scalar_select %p36, %s37, %s38
      %p42 = pneg %p36
      %p43 = scmp.eq.s32.totalorder %s13, 1
      %p44 = por %p42, %p43
      %p45 = scmp.ne.s32.totalorder %s37, %s40
      %p46 = scmp.eq.s32.totalorder %s13, 0
      %p47 = por %p45, %p46
      %p48 = scmp.ne.s32.totalorder %s37, %s40
      %p49 = scmp.eq.s32.totalorder %s18, 1
      %p50 = por %p48, %p49
      %p51 = scmp.ne.s32.totalorder %s40, %s41
      %p52 = scmp.eq.s32.totalorder %s18, 0
      %p53 = por %p51, %p52
      %p54 = scmp.ne.s32.totalorder %s40, %s41
      %p55 = scmp.eq.s32.totalorder %s19, 1
      %p56 = por %p54, %p55
      %p58 = scmp.ne.s32.totalorder %s41, %s57
      %p59 = scmp.eq.s32.totalorder %s19, 0
      %p60 = por %p58, %p59
      %s61 = ssub.s32 %s20, %s32
      %p62 = scmp.eq.s32.totalorder %s61, 0
      %s64 = sadd.s32 %s63, 1
      %s65 = scalar_select %p62, %s63, %s64
      %p68 = pneg %p62
      %p69 = scmp.eq.s32.totalorder %s13, 1
      %p70 = por %p68, %p69
      %p71 = scmp.ne.s32.totalorder %s63, %s66
      %p72 = scmp.eq.s32.totalorder %s13, 0
      %p73 = por %p71, %p72
      %p74 = scmp.ne.s32.totalorder %s63, %s66
      %p75 = scmp.eq.s32.totalorder %s18, 1
      %p76 = por %p74, %p75
      %p77 = scmp.ne.s32.totalorder %s66, %s67
      %p78 = scmp.eq.s32.totalorder %s18, 0
      %p79 = por %p77, %p78
      %p80 = scmp.ne.s32.totalorder %s66, %s67
      %p81 = scmp.eq.s32.totalorder %s19, 1
      %p82 = por %p80, %p81
      %p84 = scmp.ne.s32.totalorder %s67, %s83
      %p85 = scmp.eq.s32.totalorder %s19, 0
      %p86 = por %p84, %p85
      %p87 = scmp.le.s32.totalorder 1, %s13
      %p88 = scmp.lt.s32.totalorder %s13, 3
      %p89 = pnand %p87, %p88
      %p90 = pneg %p89
      // Predicated region
      $region9: #{tpu_custom_call.1} parent=5 // pred_check
        _
      $region10: #{tpu_custom_call.1} parent=5 // pred_check_branch
        %92 = sbr.rel (%p89) target = $region12
      $region11: #{tpu_custom_call.1} parent=5 // pred_region
        %s93 = ssub.s32 %s13, 1
      $region12: #{tpu_custom_call.1} parent=5 // pred_fallthru
        _
      %p94 = scmp.lt.s32.totalorder %s13, 2
      // Predicated region
      $region13: #{tpu_custom_call.1} parent=5 // pred_check
        %p95 = pneg %p94
      $region14: #{tpu_custom_call.1} parent=5 // pred_check_branch
        %97 = sbr.rel (%p95) target = $region16
      $region15: #{tpu_custom_call.1} parent=5 // pred_region
        // Predicated region
        $region17: #{tpu_custom_call.1} parent=15 // pred_check
          %p98 = pneg %p47
        $region18: #{tpu_custom_call.1} parent=15 // pred_check_branch
          %100 = sbr.rel (%p98) target = $region20
        $region19: #{tpu_custom_call.1} parent=15 // pred_region
          %s101 = sand.u32 %s37, 1
          %s102 = scalar_lea.sflag [#allocation3], %s101
          %s103 = sand.u32 %s37, 1
          %s104 = smul.addr %s103, 512
          %s105 = scalar_lea.vmem [#allocation2], %s104
          %s106 = sadd.s32 %s20, %s21
          %s107 = smul.u32 64, %s106
          %s109 = ssub.s32 8192, 8192
          %110 = vsyncadd %s102, %s109
          %s111 = smul.addr %s107, 128
          %s112 = scalar_lea.hbm %s0, %s111
          %s113 = sshll.u32 %s105, 4
          %s114 = int_to_ptr.vmem [resolvable:$true] %s113
          %119 = dma.hbm_to_vmem [thread:$0]  %s112, 8192, %s114, %s102, 128, 128, 8
        $region20: #{tpu_custom_call.1} parent=15 // pred_fallthru
          _
      $region16: #{tpu_custom_call.1} parent=5 // pred_fallthru
        _
      %p120 = scmp.le.s32.totalorder 1, %s13
      %p121 = scmp.lt.s32.totalorder %s13, 3
      %p122 = pnand %p120, %p121
      %p123 = pneg %p122
      // Predicated region
      $region21: #{tpu_custom_call.1} parent=5 // pred_check
        _
      $region22: #{tpu_custom_call.1} parent=5 // pred_check_branch
        %125 = sbr.rel (%p122) target = $region24
      $region23: #{tpu_custom_call.1} parent=5 // pred_region
        %s126 = ssub.s32 %s13, 1
        %s127 = sand.u32 %s40, 1
        %s128 = scalar_lea.sflag [#allocation3], %s127
        %s129 = sand.u32 %s40, 1
        %s130 = smul.addr %s129, 512
        %s131 = scalar_lea.vmem [#allocation2], %s130
        // Predicated region
        $region25: #{tpu_custom_call.1} parent=23 // pred_check
          %p132 = pneg %p53
        $region26: #{tpu_custom_call.1} parent=23 // pred_check_branch
          %134 = sbr.rel (%p132) target = $region28
        $region27: #{tpu_custom_call.1} parent=23 // pred_region
          %135 = dma.done %s128, 8192
        $region28: #{tpu_custom_call.1} parent=23 // pred_fallthru
          _
        %s136 = sand.u32 %s40, 1
        %s137 = scalar_lea.sflag [#allocation3], %s136
        %s138 = sand.u32 %s40, 1
        %s139 = smul.addr %s138, 512
        %s140 = scalar_lea.vmem [#allocation2], %s139
        %p141 = pneg %p53
        %p142 = pneg %p50
        %p143 = pneg %p79
        %p144 = pneg %p76
        %s145 = sand.u32 %s66, 1
        %s146 = scalar_lea.sflag [#allocation4], %s145
        %s147 = sand.u32 %s66, 1
        %s148 = smul.addr %s147, 8
        %s149 = scalar_lea.vmem [#allocation5], %s148
        %s150 = sadd.s32 %s22, %s23
        %s151 = smul.u32 64, %s150
        %p152 = scmp.eq.s32.totalorder %s23, 0
        // Predicated region
        $region29: #{tpu_custom_call.1} parent=23 // pred_check
          %p153 = pneg %p152
        $region30: #{tpu_custom_call.1} parent=23 // pred_check_branch
          %155 = sbr.rel (%p153) target = $region32
        $region31: #{tpu_custom_call.1} parent=23 // pred_region
          %156 = vst [vmem:[%s149] sm:$0xff] 0.0
        $region32: #{tpu_custom_call.1} parent=23 // pred_fallthru
          _
        %v157 = vld [vmem:[%s131] sm:$0xff]
        %v158 = vld [vmem:[%s131 + $0x8] sm:$0xff]
        %v159 = vld [vmem:[%s131 + $0x10] sm:$0xff]
        %v160 = vld [vmem:[%s131 + $0x18] sm:$0xff]
        %v161 = vld [vmem:[%s131 + $0x20] sm:$0xff]
        %v162 = vld [vmem:[%s131 + $0x28] sm:$0xff]
        %v163 = vld [vmem:[%s131 + $0x30] sm:$0xff]
        %v164 = vld [vmem:[%s131 + $0x38] sm:$0xff]
        %v165 = vld [vmem:[%s131 + $0x40] sm:$0xff]
        %v166 = vld [vmem:[%s131 + $0x48] sm:$0xff]
        %v167 = vld [vmem:[%s131 + $0x50] sm:$0xff]
        %v168 = vld [vmem:[%s131 + $0x58] sm:$0xff]
        %v169 = vld [vmem:[%s131 + $0x60] sm:$0xff]
        %v170 = vld [vmem:[%s131 + $0x68] sm:$0xff]
        %v171 = vld [vmem:[%s131 + $0x70] sm:$0xff]
        %v172 = vld [vmem:[%s131 + $0x78] sm:$0xff]
        %v173 = vld [vmem:[%s131 + $0x80] sm:$0xff]
        %v174 = vld [vmem:[%s131 + $0x88] sm:$0xff]
        %v175 = vld [vmem:[%s131 + $0x90] sm:$0xff]
        %v176 = vld [vmem:[%s131 + $0x98] sm:$0xff]
        %v177 = vld [vmem:[%s131 + $0xa0] sm:$0xff]
        %v178 = vld [vmem:[%s131 + $0xa8] sm:$0xff]
        %v179 = vld [vmem:[%s131 + $0xb0] sm:$0xff]
        %v180 = vld [vmem:[%s131 + $0xb8] sm:$0xff]
        %v181 = vld [vmem:[%s131 + $0xc0] sm:$0xff]
        %v182 = vld [vmem:[%s131 + $0xc8] sm:$0xff]
        %v183 = vld [vmem:[%s131 + $0xd0] sm:$0xff]
        %v184 = vld [vmem:[%s131 + $0xd8] sm:$0xff]
        %v185 = vld [vmem:[%s131 + $0xe0] sm:$0xff]
        %v186 = vld [vmem:[%s131 + $0xe8] sm:$0xff]
        %v187 = vld [vmem:[%s131 + $0xf0] sm:$0xff]
        %v188 = vld [vmem:[%s131 + $0xf8] sm:$0xff]
        %v189 = vld [vmem:[%s131 + $0x100] sm:$0xff]
        %v190 = vld [vmem:[%s131 + $0x108] sm:$0xff]
        %v191 = vld [vmem:[%s131 + $0x110] sm:$0xff]
        %v192 = vld [vmem:[%s131 + $0x118] sm:$0xff]
        %v193 = vld [vmem:[%s131 + $0x120] sm:$0xff]
        %v194 = vld [vmem:[%s131 + $0x128] sm:$0xff]
        %v195 = vld [vmem:[%s131 + $0x130] sm:$0xff]
        %v196 = vld [vmem:[%s131 + $0x138] sm:$0xff]
        %v197 = vld [vmem:[%s131 + $0x140] sm:$0xff]
        %v198 = vld [vmem:[%s131 + $0x148] sm:$0xff]
        %v199 = vld [vmem:[%s131 + $0x150] sm:$0xff]
        %v200 = vld [vmem:[%s131 + $0x158] sm:$0xff]
        %v201 = vld [vmem:[%s131 + $0x160] sm:$0xff]
        %v202 = vld [vmem:[%s131 + $0x168] sm:$0xff]
        %v203 = vld [vmem:[%s131 + $0x170] sm:$0xff]
        %v204 = vld [vmem:[%s131 + $0x178] sm:$0xff]
        %v205 = vld [vmem:[%s131 + $0x180] sm:$0xff]
        %v206 = vld [vmem:[%s131 + $0x188] sm:$0xff]
        %v207 = vld [vmem:[%s131 + $0x190] sm:$0xff]
        %v208 = vld [vmem:[%s131 + $0x198] sm:$0xff]
        %v209 = vld [vmem:[%s131 + $0x1a0] sm:$0xff]
        %v210 = vld [vmem:[%s131 + $0x1a8] sm:$0xff]
        %v211 = vld [vmem:[%s131 + $0x1b0] sm:$0xff]
        %v212 = vld [vmem:[%s131 + $0x1b8] sm:$0xff]
        %v213 = vld [vmem:[%s131 + $0x1c0] sm:$0xff]
        %v214 = vld [vmem:[%s131 + $0x1c8] sm:$0xff]
        %v215 = vld [vmem:[%s131 + $0x1d0] sm:$0xff]
        %v216 = vld [vmem:[%s131 + $0x1d8] sm:$0xff]
        %v217 = vld [vmem:[%s131 + $0x1e0] sm:$0xff]
        %v218 = vld [vmem:[%s131 + $0x1e8] sm:$0xff]
        %v219 = vld [vmem:[%s131 + $0x1f0] sm:$0xff]
        %v220 = vld [vmem:[%s131 + $0x1f8] sm:$0xff]
        %v221 = vsub.f32 0.0, %v157
        %v222 = vsub.f32 0.0, %v158
        %v223 = vsub.f32 0.0, %v159
        %v224 = vsub.f32 0.0, %v160
        %v225 = vsub.f32 0.0, %v161
        %v226 = vsub.f32 0.0, %v162
        %v227 = vsub.f32 0.0, %v163
        %v228 = vsub.f32 0.0, %v164
        %v229 = vsub.f32 0.0, %v165
        %v230 = vsub.f32 0.0, %v166
        %v231 = vsub.f32 0.0, %v167
        %v232 = vsub.f32 0.0, %v168
        %v233 = vsub.f32 0.0, %v169
        %v234 = vsub.f32 0.0, %v170
        %v235 = vsub.f32 0.0, %v171
        %v236 = vsub.f32 0.0, %v172
        %v237 = vsub.f32 0.0, %v173
        %v238 = vsub.f32 0.0, %v174
        %v239 = vsub.f32 0.0, %v175
        %v240 = vsub.f32 0.0, %v176
        %v241 = vsub.f32 0.0, %v177
        %v242 = vsub.f32 0.0, %v178
        %v243 = vsub.f32 0.0, %v179
        %v244 = vsub.f32 0.0, %v180
        %v245 = vsub.f32 0.0, %v181
        %v246 = vsub.f32 0.0, %v182
        %v247 = vsub.f32 0.0, %v183
        %v248 = vsub.f32 0.0, %v184
        %v249 = vsub.f32 0.0, %v185
        %v250 = vsub.f32 0.0, %v186
        %v251 = vsub.f32 0.0, %v187
        %v252 = vsub.f32 0.0, %v188
        %v253 = vsub.f32 0.0, %v189
        %v254 = vsub.f32 0.0, %v190
        %v255 = vsub.f32 0.0, %v191
        %v256 = vsub.f32 0.0, %v192
        %v257 = vsub.f32 0.0, %v193
        %v258 = vsub.f32 0.0, %v194
        %v259 = vsub.f32 0.0, %v195
        %v260 = vsub.f32 0.0, %v196
        %v261 = vsub.f32 0.0, %v197
        %v262 = vsub.f32 0.0, %v198
        %v263 = vsub.f32 0.0, %v199
        %v264 = vsub.f32 0.0, %v200
        %v265 = vsub.f32 0.0, %v201
        %v266 = vsub.f32 0.0, %v202
        %v267 = vsub.f32 0.0, %v203
        %v268 = vsub.f32 0.0, %v204
        %v269 = vsub.f32 0.0, %v205
        %v270 = vsub.f32 0.0, %v206
        %v271 = vsub.f32 0.0, %v207
        %v272 = vsub.f32 0.0, %v208
        %v273 = vsub.f32 0.0, %v209
        %v274 = vsub.f32 0.0, %v210
        %v275 = vsub.f32 0.0, %v211
        %v276 = vsub.f32 0.0, %v212
        %v277 = vsub.f32 0.0, %v213
        %v278 = vsub.f32 0.0, %v214
        %v279 = vsub.f32 0.0, %v215
        %v280 = vsub.f32 0.0, %v216
        %v281 = vsub.f32 0.0, %v217
        %v282 = vsub.f32 0.0, %v218
        %v283 = vsub.f32 0.0, %v219
        %v284 = vsub.f32 0.0, %v220
        %v285 = vmax.f32 %v221, 0.0
        %v286 = vmax.f32 %v222, 0.0
        %v287 = vmax.f32 %v223, 0.0
        %v288 = vmax.f32 %v224, 0.0
        %v289 = vmax.f32 %v225, 0.0
        %v290 = vmax.f32 %v226, 0.0
        %v291 = vmax.f32 %v227, 0.0
        %v292 = vmax.f32 %v228, 0.0
        %v293 = vmax.f32 %v229, 0.0
        %v294 = vmax.f32 %v230, 0.0
        %v295 = vmax.f32 %v231, 0.0
        %v296 = vmax.f32 %v232, 0.0
        %v297 = vmax.f32 %v233, 0.0
        %v298 = vmax.f32 %v234, 0.0
        %v299 = vmax.f32 %v235, 0.0
        %v300 = vmax.f32 %v236, 0.0
        %v301 = vmax.f32 %v237, 0.0
        %v302 = vmax.f32 %v238, 0.0
        %v303 = vmax.f32 %v239, 0.0
        %v304 = vmax.f32 %v240, 0.0
        %v305 = vmax.f32 %v241, 0.0
        %v306 = vmax.f32 %v242, 0.0
        %v307 = vmax.f32 %v243, 0.0
        %v308 = vmax.f32 %v244, 0.0
        %v309 = vmax.f32 %v245, 0.0
        %v310 = vmax.f32 %v246, 0.0
        %v311 = vmax.f32 %v247, 0.0
        %v312 = vmax.f32 %v248, 0.0
        %v313 = vmax.f32 %v249, 0.0
        %v314 = vmax.f32 %v250, 0.0
        %v315 = vmax.f32 %v251, 0.0
        %v316 = vmax.f32 %v252, 0.0
        %v317 = vmax.f32 %v253, 0.0
        %v318 = vmax.f32 %v254, 0.0
        %v319 = vmax.f32 %v255, 0.0
        %v320 = vmax.f32 %v256, 0.0
        %v321 = vmax.f32 %v257, 0.0
        %v322 = vmax.f32 %v258, 0.0
        %v323 = vmax.f32 %v259, 0.0
        %v324 = vmax.f32 %v260, 0.0
        %v325 = vmax.f32 %v261, 0.0
        %v326 = vmax.f32 %v262, 0.0
        %v327 = vmax.f32 %v263, 0.0
        %v328 = vmax.f32 %v264, 0.0
        %v329 = vmax.f32 %v265, 0.0
        %v330 = vmax.f32 %v266, 0.0
        %v331 = vmax.f32 %v267, 0.0
        %v332 = vmax.f32 %v268, 0.0
        %v333 = vmax.f32 %v269, 0.0
        %v334 = vmax.f32 %v270, 0.0
        %v335 = vmax.f32 %v271, 0.0
        %v336 = vmax.f32 %v272, 0.0
        %v337 = vmax.f32 %v273, 0.0
        %v338 = vmax.f32 %v274, 0.0
        %v339 = vmax.f32 %v275, 0.0
        %v340 = vmax.f32 %v276, 0.0
        %v341 = vmax.f32 %v277, 0.0
        %v342 = vmax.f32 %v278, 0.0
        %v343 = vmax.f32 %v279, 0.0
        %v344 = vmax.f32 %v280, 0.0
        %v345 = vmax.f32 %v281, 0.0
        %v346 = vmax.f32 %v282, 0.0
        %v347 = vmax.f32 %v283, 0.0
        %v348 = vmax.f32 %v284, 0.0
        %v349 = vand.u32 2147483647, %v221
        %v350 = vand.u32 2147483647, %v222
        %v351 = vand.u32 2147483647, %v223
        %v352 = vand.u32 2147483647, %v224
        %v353 = vand.u32 2147483647, %v225
        %v354 = vand.u32 2147483647, %v226
        %v355 = vand.u32 2147483647, %v227
        %v356 = vand.u32 2147483647, %v228
        %v357 = vand.u32 2147483647, %v229
        %v358 = vand.u32 2147483647, %v230
        %v359 = vand.u32 2147483647, %v231
        %v360 = vand.u32 2147483647, %v232
        %v361 = vand.u32 2147483647, %v233
        %v362 = vand.u32 2147483647, %v234
        %v363 = vand.u32 2147483647, %v235
        %v364 = vand.u32 2147483647, %v236
        %v365 = vand.u32 2147483647, %v237
        %v366 = vand.u32 2147483647, %v238
        %v367 = vand.u32 2147483647, %v239
        %v368 = vand.u32 2147483647, %v240
        %v369 = vand.u32 2147483647, %v241
        %v370 = vand.u32 2147483647, %v242
        %v371 = vand.u32 2147483647, %v243
        %v372 = vand.u32 2147483647, %v244
        %v373 = vand.u32 2147483647, %v245
        %v374 = vand.u32 2147483647, %v246
        %v375 = vand.u32 2147483647, %v247
        %v376 = vand.u32 2147483647, %v248
        %v377 = vand.u32 2147483647, %v249
        %v378 = vand.u32 2147483647, %v250
        %v379 = vand.u32 2147483647, %v251
        %v380 = vand.u32 2147483647, %v252
        %v381 = vand.u32 2147483647, %v253
        %v382 = vand.u32 2147483647, %v254
        %v383 = vand.u32 2147483647, %v255
        %v384 = vand.u32 2147483647, %v256
        %v385 = vand.u32 2147483647, %v257
        %v386 = vand.u32 2147483647, %v258
        %v387 = vand.u32 2147483647, %v259
        %v388 = vand.u32 2147483647, %v260
        %v389 = vand.u32 2147483647, %v261
        %v390 = vand.u32 2147483647, %v262
        %v391 = vand.u32 2147483647, %v263
        %v392 = vand.u32 2147483647, %v264
        %v393 = vand.u32 2147483647, %v265
        %v394 = vand.u32 2147483647, %v266
        %v395 = vand.u32 2147483647, %v267
        %v396 = vand.u32 2147483647, %v268
        %v397 = vand.u32 2147483647, %v269
        %v398 = vand.u32 2147483647, %v270
        %v399 = vand.u32 2147483647, %v271
        %v400 = vand.u32 2147483647, %v272
        %v401 = vand.u32 2147483647, %v273
        %v402 = vand.u32 2147483647, %v274
        %v403 = vand.u32 2147483647, %v275
        %v404 = vand.u32 2147483647, %v276
        %v405 = vand.u32 2147483647, %v277
        %v406 = vand.u32 2147483647, %v278
        %v407 = vand.u32 2147483647, %v279
        %v408 = vand.u32 2147483647, %v280
        %v409 = vand.u32 2147483647, %v281
        %v410 = vand.u32 2147483647, %v282
        %v411 = vand.u32 2147483647, %v283
        %v412 = vand.u32 2147483647, %v284
        %v413 = vsub.f32 0.0, %v349
        %v414 = vsub.f32 0.0, %v350
        %v415 = vsub.f32 0.0, %v351
        %v416 = vsub.f32 0.0, %v352
        %v417 = vsub.f32 0.0, %v353
        %v418 = vsub.f32 0.0, %v354
        %v419 = vsub.f32 0.0, %v355
        %v420 = vsub.f32 0.0, %v356
        %v421 = vsub.f32 0.0, %v357
        %v422 = vsub.f32 0.0, %v358
        %v423 = vsub.f32 0.0, %v359
        %v424 = vsub.f32 0.0, %v360
        %v425 = vsub.f32 0.0, %v361
        %v426 = vsub.f32 0.0, %v362
        %v427 = vsub.f32 0.0, %v363
        %v428 = vsub.f32 0.0, %v364
        %v429 = vsub.f32 0.0, %v365
        %v430 = vsub.f32 0.0, %v366
        %v431 = vsub.f32 0.0, %v367
        %v432 = vsub.f32 0.0, %v368
        %v433 = vsub.f32 0.0, %v369
        %v434 = vsub.f32 0.0, %v370
        %v435 = vsub.f32 0.0, %v371
        %v436 = vsub.f32 0.0, %v372
        %v437 = vsub.f32 0.0, %v373
        %v438 = vsub.f32 0.0, %v374
        %v439 = vsub.f32 0.0, %v375
        %v440 = vsub.f32 0.0, %v376
        %v441 = vsub.f32 0.0, %v377
        %v442 = vsub.f32 0.0, %v378
        %v443 = vsub.f32 0.0, %v379
        %v444 = vsub.f32 0.0, %v380
        %v445 = vsub.f32 0.0, %v381
        %v446 = vsub.f32 0.0, %v382
        %v447 = vsub.f32 0.0, %v383
        %v448 = vsub.f32 0.0, %v384
        %v449 = vsub.f32 0.0, %v385
        %v450 = vsub.f32 0.0, %v386
        %v451 = vsub.f32 0.0, %v387
        %v452 = vsub.f32 0.0, %v388
        %v453 = vsub.f32 0.0, %v389
        %v454 = vsub.f32 0.0, %v390
        %v455 = vsub.f32 0.0, %v391
        %v456 = vsub.f32 0.0, %v392
        %v457 = vsub.f32 0.0, %v393
        %v458 = vsub.f32 0.0, %v394
        %v459 = vsub.f32 0.0, %v395
        %v460 = vsub.f32 0.0, %v396
        %v461 = vsub.f32 0.0, %v397
        %v462 = vsub.f32 0.0, %v398
        %v463 = vsub.f32 0.0, %v399
        %v464 = vsub.f32 0.0, %v400
        %v465 = vsub.f32 0.0, %v401
        %v466 = vsub.f32 0.0, %v402
        %v467 = vsub.f32 0.0, %v403
        %v468 = vsub.f32 0.0, %v404
        %v469 = vsub.f32 0.0, %v405
        %v470 = vsub.f32 0.0, %v406
        %v471 = vsub.f32 0.0, %v407
        %v472 = vsub.f32 0.0, %v408
        %v473 = vsub.f32 0.0, %v409
        %v474 = vsub.f32 0.0, %v410
        %v475 = vsub.f32 0.0, %v411
        %v476 = vsub.f32 0.0, %v412
        %v477 = vmul.f32 %v413, 1.442695
        %v478 = vpow.pop %v477
        %v479 = vmul.f32 %v414, 1.442695
        %v480 = vpow.pop %v479
        %v481 = vmul.f32 %v415, 1.442695
        %v482 = vpow.pop %v481
        %v483 = vmul.f32 %v416, 1.442695
        %v484 = vpow.pop %v483
        %v485 = vmul.f32 %v417, 1.442695
        %v486 = vpow.pop %v485
        %v487 = vmul.f32 %v418, 1.442695
        %v488 = vpow.pop %v487
        %v489 = vmul.f32 %v419, 1.442695
        %v490 = vpow.pop %v489
        %v491 = vmul.f32 %v420, 1.442695
        %v492 = vpow.pop %v491
        %v493 = vmul.f32 %v421, 1.442695
        %v494 = vpow.pop %v493
        %v495 = vmul.f32 %v422, 1.442695
        %v496 = vpow.pop %v495
        %v497 = vmul.f32 %v423, 1.442695
        %v498 = vpow.pop %v497
        %v499 = vmul.f32 %v424, 1.442695
        %v500 = vpow.pop %v499
        %v501 = vmul.f32 %v425, 1.442695
        %v502 = vpow.pop %v501
        %v503 = vmul.f32 %v426, 1.442695
        %v504 = vpow.pop %v503
        %v505 = vmul.f32 %v427, 1.442695
        %v506 = vpow.pop %v505
        %v507 = vmul.f32 %v428, 1.442695
        %v508 = vpow.pop %v507
        %v509 = vmul.f32 %v429, 1.442695
        %v510 = vpow.pop %v509
        %v511 = vmul.f32 %v430, 1.442695
        %v512 = vpow.pop %v511
        %v513 = vmul.f32 %v431, 1.442695
        %v514 = vpow.pop %v513
        %v515 = vmul.f32 %v432, 1.442695
        %v516 = vpow.pop %v515
        %v517 = vmul.f32 %v433, 1.442695
        %v518 = vpow.pop %v517
        %v519 = vmul.f32 %v434, 1.442695
        %v520 = vpow.pop %v519
        %v521 = vmul.f32 %v435, 1.442695
        %v522 = vpow.pop %v521
        %v523 = vmul.f32 %v436, 1.442695
        %v524 = vpow.pop %v523
        %v525 = vmul.f32 %v437, 1.442695
        %v526 = vpow.pop %v525
        %v527 = vmul.f32 %v438, 1.442695
        %v528 = vpow.pop %v527
        %v529 = vmul.f32 %v439, 1.442695
        %v530 = vpow.pop %v529
        %v531 = vmul.f32 %v440, 1.442695
        %v532 = vpow.pop %v531
        %v533 = vmul.f32 %v441, 1.442695
        %v534 = vpow.pop %v533
        %v535 = vmul.f32 %v442, 1.442695
        %v536 = vpow.pop %v535
        %v537 = vmul.f32 %v443, 1.442695
        %v538 = vpow.pop %v537
        %v539 = vmul.f32 %v444, 1.442695
        %v540 = vpow.pop %v539
        %v541 = vmul.f32 %v445, 1.442695
        %v542 = vpow.pop %v541
        %v543 = vmul.f32 %v446, 1.442695
        %v544 = vpow.pop %v543
        %v545 = vmul.f32 %v447, 1.442695
        %v546 = vpow.pop %v545
        %v547 = vmul.f32 %v448, 1.442695
        %v548 = vpow.pop %v547
        %v549 = vmul.f32 %v449, 1.442695
        %v550 = vpow.pop %v549
        %v551 = vmul.f32 %v450, 1.442695
        %v552 = vpow.pop %v551
        %v553 = vmul.f32 %v451, 1.442695
        %v554 = vpow.pop %v553
        %v555 = vmul.f32 %v452, 1.442695
        %v556 = vpow.pop %v555
        %v557 = vmul.f32 %v453, 1.442695
        %v558 = vpow.pop %v557
        %v559 = vmul.f32 %v454, 1.442695
        %v560 = vpow.pop %v559
        %v561 = vmul.f32 %v455, 1.442695
        %v562 = vpow.pop %v561
        %v563 = vmul.f32 %v456, 1.442695
        %v564 = vpow.pop %v563
        %v565 = vmul.f32 %v457, 1.442695
        %v566 = vpow.pop %v565
        %v567 = vmul.f32 %v458, 1.442695
        %v568 = vpow.pop %v567
        %v569 = vmul.f32 %v459, 1.442695
        %v570 = vpow.pop %v569
        %v571 = vmul.f32 %v460, 1.442695
        %v572 = vpow.pop %v571
        %v573 = vmul.f32 %v461, 1.442695
        %v574 = vpow.pop %v573
        %v575 = vmul.f32 %v462, 1.442695
        %v576 = vpow.pop %v575
        %v577 = vmul.f32 %v463, 1.442695
        %v578 = vpow.pop %v577
        %v579 = vmul.f32 %v464, 1.442695
        %v580 = vpow.pop %v579
        %v581 = vmul.f32 %v465, 1.442695
        %v582 = vpow.pop %v581
        %v583 = vmul.f32 %v466, 1.442695
        %v584 = vpow.pop %v583
        %v585 = vmul.f32 %v467, 1.442695
        %v586 = vpow.pop %v585
        %v587 = vmul.f32 %v468, 1.442695
        %v588 = vpow.pop %v587
        %v589 = vmul.f32 %v469, 1.442695
        %v590 = vpow.pop %v589
        %v591 = vmul.f32 %v470, 1.442695
        %v592 = vpow.pop %v591
        %v593 = vmul.f32 %v471, 1.442695
        %v594 = vpow.pop %v593
        %v595 = vmul.f32 %v472, 1.442695
        %v596 = vpow.pop %v595
        %v597 = vmul.f32 %v473, 1.442695
        %v598 = vpow.pop %v597
        %v599 = vmul.f32 %v474, 1.442695
        %v600 = vpow.pop %v599
        %v601 = vmul.f32 %v475, 1.442695
        %v602 = vpow.pop %v601
        %v603 = vmul.f32 %v476, 1.442695
        %v604 = vpow.pop %v603
        %v605 = vadd.f32 %v478, 1.0
        %v606 = vlog2.pop %v605
        %v607 = vmul.f32 %v606, 0.6931472
        %v608 = vmul.f32 -0.5, %v478
        %v609 = vadd.f32 %v608, 1.0
        %v610 = vmul.f32 %v609, %v478
        %v611 = vand.u32 2147483647, %v478
        %vm612 = vcmp.lt.f32.partialorder %v611, 0.0004427343
        %v613 = vsel %vm612, %v610, %v607
        %v614 = vadd.f32 %v480, 1.0
        %v615 = vlog2.pop %v614
        %v616 = vmul.f32 %v615, 0.6931472
        %v617 = vmul.f32 -0.5, %v480
        %v618 = vadd.f32 %v617, 1.0
        %v619 = vmul.f32 %v618, %v480
        %v620 = vand.u32 2147483647, %v480
        %vm621 = vcmp.lt.f32.partialorder %v620, 0.0004427343
        %v622 = vsel %vm621, %v619, %v616
        %v623 = vadd.f32 %v482, 1.0
        %v624 = vlog2.pop %v623
        %v625 = vmul.f32 %v624, 0.6931472
        %v626 = vmul.f32 -0.5, %v482
        %v627 = vadd.f32 %v626, 1.0
        %v628 = vmul.f32 %v627, %v482
        %v629 = vand.u32 2147483647, %v482
        %vm630 = vcmp.lt.f32.partialorder %v629, 0.0004427343
        %v631 = vsel %vm630, %v628, %v625
        %v632 = vadd.f32 %v484, 1.0
        %v633 = vlog2.pop %v632
        %v634 = vmul.f32 %v633, 0.6931472
        %v635 = vmul.f32 -0.5, %v484
        %v636 = vadd.f32 %v635, 1.0
        %v637 = vmul.f32 %v636, %v484
        %v638 = vand.u32 2147483647, %v484
        %vm639 = vcmp.lt.f32.partialorder %v638, 0.0004427343
        %v640 = vsel %vm639, %v637, %v634
        %v641 = vadd.f32 %v486, 1.0
        %v642 = vlog2.pop %v641
        %v643 = vmul.f32 %v642, 0.6931472
        %v644 = vmul.f32 -0.5, %v486
        %v645 = vadd.f32 %v644, 1.0
        %v646 = vmul.f32 %v645, %v486
        %v647 = vand.u32 2147483647, %v486
        %vm648 = vcmp.lt.f32.partialorder %v647, 0.0004427343
        %v649 = vsel %vm648, %v646, %v643
        %v650 = vadd.f32 %v488, 1.0
        %v651 = vlog2.pop %v650
        %v652 = vmul.f32 %v651, 0.6931472
        %v653 = vmul.f32 -0.5, %v488
        %v654 = vadd.f32 %v653, 1.0
        %v655 = vmul.f32 %v654, %v488
        %v656 = vand.u32 2147483647, %v488
        %vm657 = vcmp.lt.f32.partialorder %v656, 0.0004427343
        %v658 = vsel %vm657, %v655, %v652
        %v659 = vadd.f32 %v490, 1.0
        %v660 = vlog2.pop %v659
        %v661 = vmul.f32 %v660, 0.6931472
        %v662 = vmul.f32 -0.5, %v490
        %v663 = vadd.f32 %v662, 1.0
        %v664 = vmul.f32 %v663, %v490
        %v665 = vand.u32 2147483647, %v490
        %vm666 = vcmp.lt.f32.partialorder %v665, 0.0004427343
        %v667 = vsel %vm666, %v664, %v661
        %v668 = vadd.f32 %v492, 1.0
        %v669 = vlog2.pop %v668
        %v670 = vmul.f32 %v669, 0.6931472
        %v671 = vmul.f32 -0.5, %v492
        %v672 = vadd.f32 %v671, 1.0
        %v673 = vmul.f32 %v672, %v492
        %v674 = vand.u32 2147483647, %v492
        %vm675 = vcmp.lt.f32.partialorder %v674, 0.0004427343
        %v676 = vsel %vm675, %v673, %v670
        %v677 = vadd.f32 %v494, 1.0
        %v678 = vlog2.pop %v677
        %v679 = vmul.f32 %v678, 0.6931472
        %v680 = vmul.f32 -0.5, %v494
        %v681 = vadd.f32 %v680, 1.0
        %v682 = vmul.f32 %v681, %v494
        %v683 = vand.u32 2147483647, %v494
        %vm684 = vcmp.lt.f32.partialorder %v683, 0.0004427343
        %v685 = vsel %vm684, %v682, %v679
        %v686 = vadd.f32 %v496, 1.0
        %v687 = vlog2.pop %v686
        %v688 = vmul.f32 %v687, 0.6931472
        %v689 = vmul.f32 -0.5, %v496
        %v690 = vadd.f32 %v689, 1.0
        %v691 = vmul.f32 %v690, %v496
        %v692 = vand.u32 2147483647, %v496
        %vm693 = vcmp.lt.f32.partialorder %v692, 0.0004427343
        %v694 = vsel %vm693, %v691, %v688
        %v695 = vadd.f32 %v498, 1.0
        %v696 = vlog2.pop %v695
        %v697 = vmul.f32 %v696, 0.6931472
        %v698 = vmul.f32 -0.5, %v498
        %v699 = vadd.f32 %v698, 1.0
        %v700 = vmul.f32 %v699, %v498
        %v701 = vand.u32 2147483647, %v498
        %vm702 = vcmp.lt.f32.partialorder %v701, 0.0004427343
        %v703 = vsel %vm702, %v700, %v697
        %v704 = vadd.f32 %v500, 1.0
        %v705 = vlog2.pop %v704
        %v706 = vmul.f32 %v705, 0.6931472
        %v707 = vmul.f32 -0.5, %v500
        %v708 = vadd.f32 %v707, 1.0
        %v709 = vmul.f32 %v708, %v500
        %v710 = vand.u32 2147483647, %v500
        %vm711 = vcmp.lt.f32.partialorder %v710, 0.0004427343
        %v712 = vsel %vm711, %v709, %v706
        %v713 = vadd.f32 %v502, 1.0
        %v714 = vlog2.pop %v713
        %v715 = vmul.f32 %v714, 0.6931472
        %v716 = vmul.f32 -0.5, %v502
        %v717 = vadd.f32 %v716, 1.0
        %v718 = vmul.f32 %v717, %v502
        %v719 = vand.u32 2147483647, %v502
        %vm720 = vcmp.lt.f32.partialorder %v719, 0.0004427343
        %v721 = vsel %vm720, %v718, %v715
        %v722 = vadd.f32 %v504, 1.0
        %v723 = vlog2.pop %v722
        %v724 = vmul.f32 %v723, 0.6931472
        %v725 = vmul.f32 -0.5, %v504
        %v726 = vadd.f32 %v725, 1.0
        %v727 = vmul.f32 %v726, %v504
        %v728 = vand.u32 2147483647, %v504
        %vm729 = vcmp.lt.f32.partialorder %v728, 0.0004427343
        %v730 = vsel %vm729, %v727, %v724
        %v731 = vadd.f32 %v506, 1.0
        %v732 = vlog2.pop %v731
        %v733 = vmul.f32 %v732, 0.6931472
        %v734 = vmul.f32 -0.5, %v506
        %v735 = vadd.f32 %v734, 1.0
        %v736 = vmul.f32 %v735, %v506
        %v737 = vand.u32 2147483647, %v506
        %vm738 = vcmp.lt.f32.partialorder %v737, 0.0004427343
        %v739 = vsel %vm738, %v736, %v733
        %v740 = vadd.f32 %v508, 1.0
        %v741 = vlog2.pop %v740
        %v742 = vmul.f32 %v741, 0.6931472
        %v743 = vmul.f32 -0.5, %v508
        %v744 = vadd.f32 %v743, 1.0
        %v745 = vmul.f32 %v744, %v508
        %v746 = vand.u32 2147483647, %v508
        %vm747 = vcmp.lt.f32.partialorder %v746, 0.0004427343
        %v748 = vsel %vm747, %v745, %v742
        %v749 = vadd.f32 %v510, 1.0
        %v750 = vlog2.pop %v749
        %v751 = vmul.f32 %v750, 0.6931472
        %v752 = vmul.f32 -0.5, %v510
        %v753 = vadd.f32 %v752, 1.0
        %v754 = vmul.f32 %v753, %v510
        %v755 = vand.u32 2147483647, %v510
        %vm756 = vcmp.lt.f32.partialorder %v755, 0.0004427343
        %v757 = vsel %vm756, %v754, %v751
        %v758 = vadd.f32 %v512, 1.0
        %v759 = vlog2.pop %v758
        %v760 = vmul.f32 %v759, 0.6931472
        %v761 = vmul.f32 -0.5, %v512
        %v762 = vadd.f32 %v761, 1.0
        %v763 = vmul.f32 %v762, %v512
        %v764 = vand.u32 2147483647, %v512
        %vm765 = vcmp.lt.f32.partialorder %v764, 0.0004427343
        %v766 = vsel %vm765, %v763, %v760
        %v767 = vadd.f32 %v514, 1.0
        %v768 = vlog2.pop %v767
        %v769 = vmul.f32 %v768, 0.6931472
        %v770 = vmul.f32 -0.5, %v514
        %v771 = vadd.f32 %v770, 1.0
        %v772 = vmul.f32 %v771, %v514
        %v773 = vand.u32 2147483647, %v514
        %vm774 = vcmp.lt.f32.partialorder %v773, 0.0004427343
        %v775 = vsel %vm774, %v772, %v769
        %v776 = vadd.f32 %v516, 1.0
        %v777 = vlog2.pop %v776
        %v778 = vmul.f32 %v777, 0.6931472
        %v779 = vmul.f32 -0.5, %v516
        %v780 = vadd.f32 %v779, 1.0
        %v781 = vmul.f32 %v780, %v516
        %v782 = vand.u32 2147483647, %v516
        %vm783 = vcmp.lt.f32.partialorder %v782, 0.0004427343
        %v784 = vsel %vm783, %v781, %v778
        %v785 = vadd.f32 %v518, 1.0
        %v786 = vlog2.pop %v785
        %v787 = vmul.f32 %v786, 0.6931472
        %v788 = vmul.f32 -0.5, %v518
        %v789 = vadd.f32 %v788, 1.0
        %v790 = vmul.f32 %v789, %v518
        %v791 = vand.u32 2147483647, %v518
        %vm792 = vcmp.lt.f32.partialorder %v791, 0.0004427343
        %v793 = vsel %vm792, %v790, %v787
        %v794 = vadd.f32 %v520, 1.0
        %v795 = vlog2.pop %v794
        %v796 = vmul.f32 %v795, 0.6931472
        %v797 = vmul.f32 -0.5, %v520
        %v798 = vadd.f32 %v797, 1.0
        %v799 = vmul.f32 %v798, %v520
        %v800 = vand.u32 2147483647, %v520
        %vm801 = vcmp.lt.f32.partialorder %v800, 0.0004427343
        %v802 = vsel %vm801, %v799, %v796
        %v803 = vadd.f32 %v522, 1.0
        %v804 = vlog2.pop %v803
        %v805 = vmul.f32 %v804, 0.6931472
        %v806 = vmul.f32 -0.5, %v522
        %v807 = vadd.f32 %v806, 1.0
        %v808 = vmul.f32 %v807, %v522
        %v809 = vand.u32 2147483647, %v522
        %vm810 = vcmp.lt.f32.partialorder %v809, 0.0004427343
        %v811 = vsel %vm810, %v808, %v805
        %v812 = vadd.f32 %v524, 1.0
        %v813 = vlog2.pop %v812
        %v814 = vmul.f32 %v813, 0.6931472
        %v815 = vmul.f32 -0.5, %v524
        %v816 = vadd.f32 %v815, 1.0
        %v817 = vmul.f32 %v816, %v524
        %v818 = vand.u32 2147483647, %v524
        %vm819 = vcmp.lt.f32.partialorder %v818, 0.0004427343
        %v820 = vsel %vm819, %v817, %v814
        %v821 = vadd.f32 %v526, 1.0
        %v822 = vlog2.pop %v821
        %v823 = vmul.f32 %v822, 0.6931472
        %v824 = vmul.f32 -0.5, %v526
        %v825 = vadd.f32 %v824, 1.0
        %v826 = vmul.f32 %v825, %v526
        %v827 = vand.u32 2147483647, %v526
        %vm828 = vcmp.lt.f32.partialorder %v827, 0.0004427343
        %v829 = vsel %vm828, %v826, %v823
        %v830 = vadd.f32 %v528, 1.0
        %v831 = vlog2.pop %v830
        %v832 = vmul.f32 %v831, 0.6931472
        %v833 = vmul.f32 -0.5, %v528
        %v834 = vadd.f32 %v833, 1.0
        %v835 = vmul.f32 %v834, %v528
        %v836 = vand.u32 2147483647, %v528
        %vm837 = vcmp.lt.f32.partialorder %v836, 0.0004427343
        %v838 = vsel %vm837, %v835, %v832
        %v839 = vadd.f32 %v530, 1.0
        %v840 = vlog2.pop %v839
        %v841 = vmul.f32 %v840, 0.6931472
        %v842 = vmul.f32 -0.5, %v530
        %v843 = vadd.f32 %v842, 1.0
        %v844 = vmul.f32 %v843, %v530
        %v845 = vand.u32 2147483647, %v530
        %vm846 = vcmp.lt.f32.partialorder %v845, 0.0004427343
        %v847 = vsel %vm846, %v844, %v841
        %v848 = vadd.f32 %v532, 1.0
        %v849 = vlog2.pop %v848
        %v850 = vmul.f32 %v849, 0.6931472
        %v851 = vmul.f32 -0.5, %v532
        %v852 = vadd.f32 %v851, 1.0
        %v853 = vmul.f32 %v852, %v532
        %v854 = vand.u32 2147483647, %v532
        %vm855 = vcmp.lt.f32.partialorder %v854, 0.0004427343
        %v856 = vsel %vm855, %v853, %v850
        %v857 = vadd.f32 %v534, 1.0
        %v858 = vlog2.pop %v857
        %v859 = vmul.f32 %v858, 0.6931472
        %v860 = vmul.f32 -0.5, %v534
        %v861 = vadd.f32 %v860, 1.0
        %v862 = vmul.f32 %v861, %v534
        %v863 = vand.u32 2147483647, %v534
        %vm864 = vcmp.lt.f32.partialorder %v863, 0.0004427343
        %v865 = vsel %vm864, %v862, %v859
        %v866 = vadd.f32 %v536, 1.0
        %v867 = vlog2.pop %v866
        %v868 = vmul.f32 %v867, 0.6931472
        %v869 = vmul.f32 -0.5, %v536
        %v870 = vadd.f32 %v869, 1.0
        %v871 = vmul.f32 %v870, %v536
        %v872 = vand.u32 2147483647, %v536
        %vm873 = vcmp.lt.f32.partialorder %v872, 0.0004427343
        %v874 = vsel %vm873, %v871, %v868
        %v875 = vadd.f32 %v538, 1.0
        %v876 = vlog2.pop %v875
        %v877 = vmul.f32 %v876, 0.6931472
        %v878 = vmul.f32 -0.5, %v538
        %v879 = vadd.f32 %v878, 1.0
        %v880 = vmul.f32 %v879, %v538
        %v881 = vand.u32 2147483647, %v538
        %vm882 = vcmp.lt.f32.partialorder %v881, 0.0004427343
        %v883 = vsel %vm882, %v880, %v877
        %v884 = vadd.f32 %v540, 1.0
        %v885 = vlog2.pop %v884
        %v886 = vmul.f32 %v885, 0.6931472
        %v887 = vmul.f32 -0.5, %v540
        %v888 = vadd.f32 %v887, 1.0
        %v889 = vmul.f32 %v888, %v540
        %v890 = vand.u32 2147483647, %v540
        %vm891 = vcmp.lt.f32.partialorder %v890, 0.0004427343
        %v892 = vsel %vm891, %v889, %v886
        %v893 = vadd.f32 %v542, 1.0
        %v894 = vlog2.pop %v893
        %v895 = vmul.f32 %v894, 0.6931472
        %v896 = vmul.f32 -0.5, %v542
        %v897 = vadd.f32 %v896, 1.0
        %v898 = vmul.f32 %v897, %v542
        %v899 = vand.u32 2147483647, %v542
        %vm900 = vcmp.lt.f32.partialorder %v899, 0.0004427343
        %v901 = vsel %vm900, %v898, %v895
        %v902 = vadd.f32 %v544, 1.0
        %v903 = vlog2.pop %v902
        %v904 = vmul.f32 %v903, 0.6931472
        %v905 = vmul.f32 -0.5, %v544
        %v906 = vadd.f32 %v905, 1.0
        %v907 = vmul.f32 %v906, %v544
        %v908 = vand.u32 2147483647, %v544
        %vm909 = vcmp.lt.f32.partialorder %v908, 0.0004427343
        %v910 = vsel %vm909, %v907, %v904
        %v911 = vadd.f32 %v546, 1.0
        %v912 = vlog2.pop %v911
        %v913 = vmul.f32 %v912, 0.6931472
        %v914 = vmul.f32 -0.5, %v546
        %v915 = vadd.f32 %v914, 1.0
        %v916 = vmul.f32 %v915, %v546
        %v917 = vand.u32 2147483647, %v546
        %vm918 = vcmp.lt.f32.partialorder %v917, 0.0004427343
        %v919 = vsel %vm918, %v916, %v913
        %v920 = vadd.f32 %v548, 1.0
        %v921 = vlog2.pop %v920
        %v922 = vmul.f32 %v921, 0.6931472
        %v923 = vmul.f32 -0.5, %v548
        %v924 = vadd.f32 %v923, 1.0
        %v925 = vmul.f32 %v924, %v548
        %v926 = vand.u32 2147483647, %v548
        %vm927 = vcmp.lt.f32.partialorder %v926, 0.0004427343
        %v928 = vsel %vm927, %v925, %v922
        %v929 = vadd.f32 %v550, 1.0
        %v930 = vlog2.pop %v929
        %v931 = vmul.f32 %v930, 0.6931472
        %v932 = vmul.f32 -0.5, %v550
        %v933 = vadd.f32 %v932, 1.0
        %v934 = vmul.f32 %v933, %v550
        %v935 = vand.u32 2147483647, %v550
        %vm936 = vcmp.lt.f32.partialorder %v935, 0.0004427343
        %v937 = vsel %vm936, %v934, %v931
        %v938 = vadd.f32 %v552, 1.0
        %v939 = vlog2.pop %v938
        %v940 = vmul.f32 %v939, 0.6931472
        %v941 = vmul.f32 -0.5, %v552
        %v942 = vadd.f32 %v941, 1.0
        %v943 = vmul.f32 %v942, %v552
        %v944 = vand.u32 2147483647, %v552
        %vm945 = vcmp.lt.f32.partialorder %v944, 0.0004427343
        %v946 = vsel %vm945, %v943, %v940
        %v947 = vadd.f32 %v554, 1.0
        %v948 = vlog2.pop %v947
        %v949 = vmul.f32 %v948, 0.6931472
        %v950 = vmul.f32 -0.5, %v554
        %v951 = vadd.f32 %v950, 1.0
        %v952 = vmul.f32 %v951, %v554
        %v953 = vand.u32 2147483647, %v554
        %vm954 = vcmp.lt.f32.partialorder %v953, 0.0004427343
        %v955 = vsel %vm954, %v952, %v949
        %v956 = vadd.f32 %v556, 1.0
        %v957 = vlog2.pop %v956
        %v958 = vmul.f32 %v957, 0.6931472
        %v959 = vmul.f32 -0.5, %v556
        %v960 = vadd.f32 %v959, 1.0
        %v961 = vmul.f32 %v960, %v556
        %v962 = vand.u32 2147483647, %v556
        %vm963 = vcmp.lt.f32.partialorder %v962, 0.0004427343
        %v964 = vsel %vm963, %v961, %v958
        %v965 = vadd.f32 %v558, 1.0
        %v966 = vlog2.pop %v965
        %v967 = vmul.f32 %v966, 0.6931472
        %v968 = vmul.f32 -0.5, %v558
        %v969 = vadd.f32 %v968, 1.0
        %v970 = vmul.f32 %v969, %v558
        %v971 = vand.u32 2147483647, %v558
        %vm972 = vcmp.lt.f32.partialorder %v971, 0.0004427343
        %v973 = vsel %vm972, %v970, %v967
        %v974 = vadd.f32 %v560, 1.0
        %v975 = vlog2.pop %v974
        %v976 = vmul.f32 %v975, 0.6931472
        %v977 = vmul.f32 -0.5, %v560
        %v978 = vadd.f32 %v977, 1.0
        %v979 = vmul.f32 %v978, %v560
        %v980 = vand.u32 2147483647, %v560
        %vm981 = vcmp.lt.f32.partialorder %v980, 0.0004427343
        %v982 = vsel %vm981, %v979, %v976
        %v983 = vadd.f32 %v562, 1.0
        %v984 = vlog2.pop %v983
        %v985 = vmul.f32 %v984, 0.6931472
        %v986 = vmul.f32 -0.5, %v562
        %v987 = vadd.f32 %v986, 1.0
        %v988 = vmul.f32 %v987, %v562
        %v989 = vand.u32 2147483647, %v562
        %vm990 = vcmp.lt.f32.partialorder %v989, 0.0004427343
        %v991 = vsel %vm990, %v988, %v985
        %v992 = vadd.f32 %v564, 1.0
        %v993 = vlog2.pop %v992
        %v994 = vmul.f32 %v993, 0.6931472
        %v995 = vmul.f32 -0.5, %v564
        %v996 = vadd.f32 %v995, 1.0
        %v997 = vmul.f32 %v996, %v564
        %v998 = vand.u32 2147483647, %v564
        %vm999 = vcmp.lt.f32.partialorder %v998, 0.0004427343
        %v1000 = vsel %vm999, %v997, %v994
        %v1001 = vadd.f32 %v566, 1.0
        %v1002 = vlog2.pop %v1001
        %v1003 = vmul.f32 %v1002, 0.6931472
        %v1004 = vmul.f32 -0.5, %v566
        %v1005 = vadd.f32 %v1004, 1.0
        %v1006 = vmul.f32 %v1005, %v566
        %v1007 = vand.u32 2147483647, %v566
        %vm1008 = vcmp.lt.f32.partialorder %v1007, 0.0004427343
        %v1009 = vsel %vm1008, %v1006, %v1003
        %v1010 = vadd.f32 %v568, 1.0
        %v1011 = vlog2.pop %v1010
        %v1012 = vmul.f32 %v1011, 0.6931472
        %v1013 = vmul.f32 -0.5, %v568
        %v1014 = vadd.f32 %v1013, 1.0
        %v1015 = vmul.f32 %v1014, %v568
        %v1016 = vand.u32 2147483647, %v568
        %vm1017 = vcmp.lt.f32.partialorder %v1016, 0.0004427343
        %v1018 = vsel %vm1017, %v1015, %v1012
        %v1019 = vadd.f32 %v570, 1.0
        %v1020 = vlog2.pop %v1019
        %v1021 = vmul.f32 %v1020, 0.6931472
        %v1022 = vmul.f32 -0.5, %v570
        %v1023 = vadd.f32 %v1022, 1.0
        %v1024 = vmul.f32 %v1023, %v570
        %v1025 = vand.u32 2147483647, %v570
        %vm1026 = vcmp.lt.f32.partialorder %v1025, 0.0004427343
        %v1027 = vsel %vm1026, %v1024, %v1021
        %v1028 = vadd.f32 %v572, 1.0
        %v1029 = vlog2.pop %v1028
        %v1030 = vmul.f32 %v1029, 0.6931472
        %v1031 = vmul.f32 -0.5, %v572
        %v1032 = vadd.f32 %v1031, 1.0
        %v1033 = vmul.f32 %v1032, %v572
        %v1034 = vand.u32 2147483647, %v572
        %vm1035 = vcmp.lt.f32.partialorder %v1034, 0.0004427343
        %v1036 = vsel %vm1035, %v1033, %v1030
        %v1037 = vadd.f32 %v574, 1.0
        %v1038 = vlog2.pop %v1037
        %v1039 = vmul.f32 %v1038, 0.6931472
        %v1040 = vmul.f32 -0.5, %v574
        %v1041 = vadd.f32 %v1040, 1.0
        %v1042 = vmul.f32 %v1041, %v574
        %v1043 = vand.u32 2147483647, %v574
        %vm1044 = vcmp.lt.f32.partialorder %v1043, 0.0004427343
        %v1045 = vsel %vm1044, %v1042, %v1039
        %v1046 = vadd.f32 %v576, 1.0
        %v1047 = vlog2.pop %v1046
        %v1048 = vmul.f32 %v1047, 0.6931472
        %v1049 = vmul.f32 -0.5, %v576
        %v1050 = vadd.f32 %v1049, 1.0
        %v1051 = vmul.f32 %v1050, %v576
        %v1052 = vand.u32 2147483647, %v576
        %vm1053 = vcmp.lt.f32.partialorder %v1052, 0.0004427343
        %v1054 = vsel %vm1053, %v1051, %v1048
        %v1055 = vadd.f32 %v578, 1.0
        %v1056 = vlog2.pop %v1055
        %v1057 = vmul.f32 %v1056, 0.6931472
        %v1058 = vmul.f32 -0.5, %v578
        %v1059 = vadd.f32 %v1058, 1.0
        %v1060 = vmul.f32 %v1059, %v578
        %v1061 = vand.u32 2147483647, %v578
        %vm1062 = vcmp.lt.f32.partialorder %v1061, 0.0004427343
        %v1063 = vsel %vm1062, %v1060, %v1057
        %v1064 = vadd.f32 %v580, 1.0
        %v1065 = vlog2.pop %v1064
        %v1066 = vmul.f32 %v1065, 0.6931472
        %v1067 = vmul.f32 -0.5, %v580
        %v1068 = vadd.f32 %v1067, 1.0
        %v1069 = vmul.f32 %v1068, %v580
        %v1070 = vand.u32 2147483647, %v580
        %vm1071 = vcmp.lt.f32.partialorder %v1070, 0.0004427343
        %v1072 = vsel %vm1071, %v1069, %v1066
        %v1073 = vadd.f32 %v582, 1.0
        %v1074 = vlog2.pop %v1073
        %v1075 = vmul.f32 %v1074, 0.6931472
        %v1076 = vmul.f32 -0.5, %v582
        %v1077 = vadd.f32 %v1076, 1.0
        %v1078 = vmul.f32 %v1077, %v582
        %v1079 = vand.u32 2147483647, %v582
        %vm1080 = vcmp.lt.f32.partialorder %v1079, 0.0004427343
        %v1081 = vsel %vm1080, %v1078, %v1075
        %v1082 = vadd.f32 %v584, 1.0
        %v1083 = vlog2.pop %v1082
        %v1084 = vmul.f32 %v1083, 0.6931472
        %v1085 = vmul.f32 -0.5, %v584
        %v1086 = vadd.f32 %v1085, 1.0
        %v1087 = vmul.f32 %v1086, %v584
        %v1088 = vand.u32 2147483647, %v584
        %vm1089 = vcmp.lt.f32.partialorder %v1088, 0.0004427343
        %v1090 = vsel %vm1089, %v1087, %v1084
        %v1091 = vadd.f32 %v586, 1.0
        %v1092 = vlog2.pop %v1091
        %v1093 = vmul.f32 %v1092, 0.6931472
        %v1094 = vmul.f32 -0.5, %v586
        %v1095 = vadd.f32 %v1094, 1.0
        %v1096 = vmul.f32 %v1095, %v586
        %v1097 = vand.u32 2147483647, %v586
        %vm1098 = vcmp.lt.f32.partialorder %v1097, 0.0004427343
        %v1099 = vsel %vm1098, %v1096, %v1093
        %v1100 = vadd.f32 %v588, 1.0
        %v1101 = vlog2.pop %v1100
        %v1102 = vmul.f32 %v1101, 0.6931472
        %v1103 = vmul.f32 -0.5, %v588
        %v1104 = vadd.f32 %v1103, 1.0
        %v1105 = vmul.f32 %v1104, %v588
        %v1106 = vand.u32 2147483647, %v588
        %vm1107 = vcmp.lt.f32.partialorder %v1106, 0.0004427343
        %v1108 = vsel %vm1107, %v1105, %v1102
        %v1109 = vadd.f32 %v590, 1.0
        %v1110 = vlog2.pop %v1109
        %v1111 = vmul.f32 %v1110, 0.6931472
        %v1112 = vmul.f32 -0.5, %v590
        %v1113 = vadd.f32 %v1112, 1.0
        %v1114 = vmul.f32 %v1113, %v590
        %v1115 = vand.u32 2147483647, %v590
        %vm1116 = vcmp.lt.f32.partialorder %v1115, 0.0004427343
        %v1117 = vsel %vm1116, %v1114, %v1111
        %v1118 = vadd.f32 %v592, 1.0
        %v1119 = vlog2.pop %v1118
        %v1120 = vmul.f32 %v1119, 0.6931472
        %v1121 = vmul.f32 -0.5, %v592
        %v1122 = vadd.f32 %v1121, 1.0
        %v1123 = vmul.f32 %v1122, %v592
        %v1124 = vand.u32 2147483647, %v592
        %vm1125 = vcmp.lt.f32.partialorder %v1124, 0.0004427343
        %v1126 = vsel %vm1125, %v1123, %v1120
        %v1127 = vadd.f32 %v594, 1.0
        %v1128 = vlog2.pop %v1127
        %v1129 = vmul.f32 %v1128, 0.6931472
        %v1130 = vmul.f32 -0.5, %v594
        %v1131 = vadd.f32 %v1130, 1.0
        %v1132 = vmul.f32 %v1131, %v594
        %v1133 = vand.u32 2147483647, %v594
        %vm1134 = vcmp.lt.f32.partialorder %v1133, 0.0004427343
        %v1135 = vsel %vm1134, %v1132, %v1129
        %v1136 = vadd.f32 %v596, 1.0
        %v1137 = vlog2.pop %v1136
        %v1138 = vmul.f32 %v1137, 0.6931472
        %v1139 = vmul.f32 -0.5, %v596
        %v1140 = vadd.f32 %v1139, 1.0
        %v1141 = vmul.f32 %v1140, %v596
        %v1142 = vand.u32 2147483647, %v596
        %vm1143 = vcmp.lt.f32.partialorder %v1142, 0.0004427343
        %v1144 = vsel %vm1143, %v1141, %v1138
        %v1145 = vadd.f32 %v598, 1.0
        %v1146 = vlog2.pop %v1145
        %v1147 = vmul.f32 %v1146, 0.6931472
        %v1148 = vmul.f32 -0.5, %v598
        %v1149 = vadd.f32 %v1148, 1.0
        %v1150 = vmul.f32 %v1149, %v598
        %v1151 = vand.u32 2147483647, %v598
        %vm1152 = vcmp.lt.f32.partialorder %v1151, 0.0004427343
        %v1153 = vsel %vm1152, %v1150, %v1147
        %v1154 = vadd.f32 %v600, 1.0
        %v1155 = vlog2.pop %v1154
        %v1156 = vmul.f32 %v1155, 0.6931472
        %v1157 = vmul.f32 -0.5, %v600
        %v1158 = vadd.f32 %v1157, 1.0
        %v1159 = vmul.f32 %v1158, %v600
        %v1160 = vand.u32 2147483647, %v600
        %vm1161 = vcmp.lt.f32.partialorder %v1160, 0.0004427343
        %v1162 = vsel %vm1161, %v1159, %v1156
        %v1163 = vadd.f32 %v602, 1.0
        %v1164 = vlog2.pop %v1163
        %v1165 = vmul.f32 %v1164, 0.6931472
        %v1166 = vmul.f32 -0.5, %v602
        %v1167 = vadd.f32 %v1166, 1.0
        %v1168 = vmul.f32 %v1167, %v602
        %v1169 = vand.u32 2147483647, %v602
        %vm1170 = vcmp.lt.f32.partialorder %v1169, 0.0004427343
        %v1171 = vsel %vm1170, %v1168, %v1165
        %v1172 = vadd.f32 %v604, 1.0
        %v1173 = vlog2.pop %v1172
        %v1174 = vmul.f32 %v1173, 0.6931472
        %v1175 = vmul.f32 -0.5, %v604
        %v1176 = vadd.f32 %v1175, 1.0
        %v1177 = vmul.f32 %v1176, %v604
        %v1178 = vand.u32 2147483647, %v604
        %vm1179 = vcmp.lt.f32.partialorder %v1178, 0.0004427343
        %v1180 = vsel %vm1179, %v1177, %v1174
        %v1181 = vadd.f32 %v285, %v613
        %v1182 = vadd.f32 %v286, %v622
        %v1183 = vadd.f32 %v287, %v631
        %v1184 = vadd.f32 %v288, %v640
        %v1185 = vadd.f32 %v289, %v649
        %v1186 = vadd.f32 %v290, %v658
        %v1187 = vadd.f32 %v291, %v667
        %v1188 = vadd.f32 %v292, %v676
        %v1189 = vadd.f32 %v293, %v685
        %v1190 = vadd.f32 %v294, %v694
        %v1191 = vadd.f32 %v295, %v703
        %v1192 = vadd.f32 %v296, %v712
        %v1193 = vadd.f32 %v297, %v721
        %v1194 = vadd.f32 %v298, %v730
        %v1195 = vadd.f32 %v299, %v739
        %v1196 = vadd.f32 %v300, %v748
        %v1197 = vadd.f32 %v301, %v757
        %v1198 = vadd.f32 %v302, %v766
        %v1199 = vadd.f32 %v303, %v775
        %v1200 = vadd.f32 %v304, %v784
        %v1201 = vadd.f32 %v305, %v793
        %v1202 = vadd.f32 %v306, %v802
        %v1203 = vadd.f32 %v307, %v811
        %v1204 = vadd.f32 %v308, %v820
        %v1205 = vadd.f32 %v309, %v829
        %v1206 = vadd.f32 %v310, %v838
        %v1207 = vadd.f32 %v311, %v847
        %v1208 = vadd.f32 %v312, %v856
        %v1209 = vadd.f32 %v313, %v865
        %v1210 = vadd.f32 %v314, %v874
        %v1211 = vadd.f32 %v315, %v883
        %v1212 = vadd.f32 %v316, %v892
        %v1213 = vadd.f32 %v317, %v901
        %v1214 = vadd.f32 %v318, %v910
        %v1215 = vadd.f32 %v319, %v919
        %v1216 = vadd.f32 %v320, %v928
        %v1217 = vadd.f32 %v321, %v937
        %v1218 = vadd.f32 %v322, %v946
        %v1219 = vadd.f32 %v323, %v955
        %v1220 = vadd.f32 %v324, %v964
        %v1221 = vadd.f32 %v325, %v973
        %v1222 = vadd.f32 %v326, %v982
        %v1223 = vadd.f32 %v327, %v991
        %v1224 = vadd.f32 %v328, %v1000
        %v1225 = vadd.f32 %v329, %v1009
        %v1226 = vadd.f32 %v330, %v1018
        %v1227 = vadd.f32 %v331, %v1027
        %v1228 = vadd.f32 %v332, %v1036
        %v1229 = vadd.f32 %v333, %v1045
        %v1230 = vadd.f32 %v334, %v1054
        %v1231 = vadd.f32 %v335, %v1063
        %v1232 = vadd.f32 %v336, %v1072
        %v1233 = vadd.f32 %v337, %v1081
        %v1234 = vadd.f32 %v338, %v1090
        %v1235 = vadd.f32 %v339, %v1099
        %v1236 = vadd.f32 %v340, %v1108
        %v1237 = vadd.f32 %v341, %v1117
        %v1238 = vadd.f32 %v342, %v1126
        %v1239 = vadd.f32 %v343, %v1135
        %v1240 = vadd.f32 %v344, %v1144
        %v1241 = vadd.f32 %v345, %v1153
        %v1242 = vadd.f32 %v346, %v1162
        %v1243 = vadd.f32 %v347, %v1171
        %v1244 = vadd.f32 %v348, %v1180
        %v1245 = vld [vmem:[%s149] sm:$0xff]
        %v1246 = vadd.f32 %v1181, %v1182
        %v1247 = vadd.f32 %v1246, %v1183
        %v1248 = vadd.f32 %v1247, %v1184
        %v1249 = vadd.f32 %v1248, %v1185
        %v1250 = vadd.f32 %v1249, %v1186
        %v1251 = vadd.f32 %v1250, %v1187
        %v1252 = vadd.f32 %v1251, %v1188
        %v1253 = vadd.f32 %v1252, %v1189
        %v1254 = vadd.f32 %v1253, %v1190
        %v1255 = vadd.f32 %v1254, %v1191
        %v1256 = vadd.f32 %v1255, %v1192
        %v1257 = vadd.f32 %v1256, %v1193
        %v1258 = vadd.f32 %v1257, %v1194
        %v1259 = vadd.f32 %v1258, %v1195
        %v1260 = vadd.f32 %v1259, %v1196
        %v1261 = vadd.f32 %v1260, %v1197
        %v1262 = vadd.f32 %v1261, %v1198
        %v1263 = vadd.f32 %v1262, %v1199
        %v1264 = vadd.f32 %v1263, %v1200
        %v1265 = vadd.f32 %v1264, %v1201
        %v1266 = vadd.f32 %v1265, %v1202
        %v1267 = vadd.f32 %v1266, %v1203
        %v1268 = vadd.f32 %v1267, %v1204
        %v1269 = vadd.f32 %v1268, %v1205
        %v1270 = vadd.f32 %v1269, %v1206
        %v1271 = vadd.f32 %v1270, %v1207
        %v1272 = vadd.f32 %v1271, %v1208
        %v1273 = vadd.f32 %v1272, %v1209
        %v1274 = vadd.f32 %v1273, %v1210
        %v1275 = vadd.f32 %v1274, %v1211
        %v1276 = vadd.f32 %v1275, %v1212
        %v1277 = vadd.f32 %v1276, %v1213
        %v1278 = vadd.f32 %v1277, %v1214
        %v1279 = vadd.f32 %v1278, %v1215
        %v1280 = vadd.f32 %v1279, %v1216
        %v1281 = vadd.f32 %v1280, %v1217
        %v1282 = vadd.f32 %v1281, %v1218
        %v1283 = vadd.f32 %v1282, %v1219
        %v1284 = vadd.f32 %v1283, %v1220
        %v1285 = vadd.f32 %v1284, %v1221
        %v1286 = vadd.f32 %v1285, %v1222
        %v1287 = vadd.f32 %v1286, %v1223
        %v1288 = vadd.f32 %v1287, %v1224
        %v1289 = vadd.f32 %v1288, %v1225
        %v1290 = vadd.f32 %v1289, %v1226
        %v1291 = vadd.f32 %v1290, %v1227
        %v1292 = vadd.f32 %v1291, %v1228
        %v1293 = vadd.f32 %v1292, %v1229
        %v1294 = vadd.f32 %v1293, %v1230
        %v1295 = vadd.f32 %v1294, %v1231
        %v1296 = vadd.f32 %v1295, %v1232
        %v1297 = vadd.f32 %v1296, %v1233
        %v1298 = vadd.f32 %v1297, %v1234
        %v1299 = vadd.f32 %v1298, %v1235
        %v1300 = vadd.f32 %v1299, %v1236
        %v1301 = vadd.f32 %v1300, %v1237
        %v1302 = vadd.f32 %v1301, %v1238
        %v1303 = vadd.f32 %v1302, %v1239
        %v1304 = vadd.f32 %v1303, %v1240
        %v1305 = vadd.f32 %v1304, %v1241
        %v1306 = vadd.f32 %v1305, %v1242
        %v1307 = vadd.f32 %v1306, %v1243
        %v1308 = vadd.f32 %v1307, %v1244
        %v1309 = vadd.f32 %v1245, %v1308
        %1310 = vst [vmem:[%s149] sm:$0xff] %v1309
        %s1311 = sand.u32 %s66, 1
        %s1312 = scalar_lea.sflag [#allocation4], %s1311
        %s1313 = sand.u32 %s66, 1
        %s1314 = smul.addr %s1313, 8
        %s1315 = scalar_lea.vmem [#allocation5], %s1314
        // Predicated region
        $region33: #{tpu_custom_call.1} parent=23 // pred_check
          %p1316 = pneg %p76
        $region34: #{tpu_custom_call.1} parent=23 // pred_check_branch
          %1318 = sbr.rel (%p1316) target = $region36
        $region35: #{tpu_custom_call.1} parent=23 // pred_region
          %s1320 = ssub.s32 128, 128
          %1321 = vsyncadd %s1312, %s1320
          %s1322 = smul.addr %s22, 128
          %s1323 = scalar_lea.hbm %s1, %s1322
          %s1325 = sshll.u32 %s1315, 4
          %s1326 = int_to_ptr.vmem [resolvable:$true] %s1325
          %1328 = dma.vmem_to_hbm [thread:$0]  %s1326, 128, %s1323, %s1312
        $region36: #{tpu_custom_call.1} parent=23 // pred_fallthru
          _
      $region24: #{tpu_custom_call.1} parent=5 // pred_fallthru
        _
      %p1329 = scmp.le.s32.totalorder 2, %s13
      // Predicated region
      $region37: #{tpu_custom_call.1} parent=5 // pred_check
        %p1330 = pneg %p1329
      $region38: #{tpu_custom_call.1} parent=5 // pred_check_branch
        %1332 = sbr.rel (%p1330) target = $region40
      $region39: #{tpu_custom_call.1} parent=5 // pred_region
        %s1333 = ssub.s32 %s13, 2
        // Predicated region
        $region41: #{tpu_custom_call.1} parent=39 // pred_check
          %p1334 = pneg %p82
        $region42: #{tpu_custom_call.1} parent=39 // pred_check_branch
          %1336 = sbr.rel (%p1334) target = $region44
        $region43: #{tpu_custom_call.1} parent=39 // pred_region
          %s1337 = sand.u32 %s67, 1
          %s1338 = scalar_lea.sflag [#allocation4], %s1337
          %s1339 = sand.u32 %s67, 1
          %s1340 = smul.addr %s1339, 8
          %s1341 = scalar_lea.vmem [#allocation5], %s1340
          %1342 = dma.done %s1338, 128
        $region44: #{tpu_custom_call.1} parent=39 // pred_fallthru
          _
      $region40: #{tpu_custom_call.1} parent=5 // pred_fallthru
        _
    $region6: #{tpu_custom_call.1} parent=1 // loop_footer
      %s17 = sadd.s32 1, %s13
    $region7: #{tpu_custom_call.1} parent=1 // loop_footer_branch
      %12 = sbr.rel target = $region3
    $region8: #{tpu_custom_call.1} parent=1 // loop_exit
      _
    %1343 = vsyncpa [#allocation3], 1
    %s1344 = scalar_lea.sflag [#allocation3], 1
    %1345 = vsyncpa %s1344, 1
    %1346 = vsyncpa [#allocation4], 1
    %s1347 = scalar_lea.sflag [#allocation4], 1
    %1348 = vsyncpa %s1347, 1

</llo_original>
